<compile_context>
chip_gen: v5e
topology: v5e:2x2
jax: 0.10.0
libtpu: 0.0.40
codegen_flags: <defaults>
</compile_context>

<pallas_src>
import functools

import jax
import jax.numpy as jnp
from jax.experimental import pallas as pl
from jax.experimental.pallas import tpu as pltpu


def _round_up(x, m):
    return ((x + m - 1) // m) * m


def _largest_aligned_divisor(total, want, align):
    """Largest multiple of `align` that divides `total` and is <= want."""
    want = min(want, total)
    t = (want // align) * align
    while t >= align:
        if total % t == 0:
            return t
        t -= align
    return total  # no aligned divisor (shouldn't happen: total is 128-aligned)


def _chip_config():
    """(row-tile target, VMEM capacity bytes, has-two-TensorCores)."""
    kind = ""
    try:
        kind = jax.devices()[0].device_kind.lower()
    except Exception:
        pass
    try:
        vmem_cap = int(pltpu.get_tpu_info().vmem_capacity_bytes)
    except Exception:
        vmem_cap = 64 * 1024 * 1024  # conservative (v7x)
    # Roofline-driven row-tile targets (weight-streaming intensity ~ tm FLOPs/B).
    if "v5e" in kind or "v5 lite" in kind or "v5lite" in kind:
        tm = 256        # v5e ridge ~240 FLOPs/B: already compute-bound
    elif "v6" in kind:
        tm = 1024       # v6e ridge ~680 FLOPs/B; 128 MiB VMEM affords it
    elif "7" in kind:
        tm = 512        # v7x ridge ~310 FLOPs/B, 64 MiB VMEM
    else:
        tm = 512
    two_tc = "7" in kind
    return tm, vmem_cap, two_tc


def _ffwd_kernel(x_ref, w1_ref, b1_ref, w2_ref, b2_ref, o_ref, acc_ref):
    # x_ref : (tm, E)   tile of input rows
    # w1_ref: (E, th)   hidden-dim tile of W1
    # b1_ref: (1, th)
    # w2_ref: (th, E)   hidden-dim tile of W2
    # b2_ref: (1, E)
    # o_ref : (tm, E)
    # acc_ref: (tm, E) f32 accumulator (persists across the hidden grid axis)
    h = pl.program_id(1)

    @pl.when(h == 0)
    def _init():
        acc_ref[...] = jnp.zeros_like(acc_ref)

    # First matmul + bias + ReLU for this hidden tile (f32 accumulate on MXU,
    # operands stay in their native dtype -> bf16 runs at full MXU rate).
    hid = jnp.dot(x_ref[...], w1_ref[...],
                  preferred_element_type=jnp.float32) + b1_ref[...]
    hid = jnp.maximum(hid, 0.0)  # ReLU

    # Partial second matmul: accumulate this hidden tile's contribution.
    acc_ref[...] += jnp.dot(hid.astype(w2_ref.dtype), w2_ref[...],
                            preferred_element_type=jnp.float32)

    @pl.when(h == pl.num_programs(1) - 1)
    def _finalize():
        # Dropout(p=0.0) == identity in both train and eval -> nothing to do.
        o_ref[...] = (acc_ref[...] + b2_ref[...]).astype(o_ref.dtype)


@functools.partial(jax.jit, static_argnames=("tm", "th", "use_bf16"))
def feed_forward(x, w1, b1, w2, b2, *, tm=None, th=None, use_bf16=False):
    """x: (..., E). w1: (E, 4E), b1: (4E,), w2: (4E, E), b2: (E,).

    use_bf16=True casts x/W1/W2 to bf16 (f32 accumulation kept) — opt-in
    accuracy/throughput tradeoff.
    """
    E = x.shape[-1]
    H = w1.shape[1]
    lead = x.shape[:-1]
    out_dtype = x.dtype
    x2 = x.reshape(-1, E)
    M = x2.shape[0]

    tm_default, vmem_cap, two_tc = _chip_config()
    if tm is None:
        tm = tm_default
    if th is None:
        th = 512

    # ---- Lane-dense padding: E and H up to multiples of 128 (toy sizes). ----
    E_pad = max(_round_up(E, 128), 128)
    H_pad = max(_round_up(H, 128), 128)
    if E_pad != E:
        x2 = jnp.pad(x2, ((0, 0), (0, E_pad - E)))
        w1 = jnp.pad(w1, ((0, E_pad - E), (0, 0)))
        w2 = jnp.pad(w2, ((0, 0), (0, E_pad - E)))
        b2 = jnp.pad(b2, ((0, E_pad - E),))
    if H_pad != H:
        w1 = jnp.pad(w1, ((0, 0), (0, H_pad - H)))
        b1 = jnp.pad(b1, ((0, H_pad - H),))
        w2 = jnp.pad(w2, ((0, H_pad - H), (0, 0)))

    if use_bf16:
        x2 = x2.astype(jnp.bfloat16)
        w1 = w1.astype(jnp.bfloat16)
        w2 = w2.astype(jnp.bfloat16)

    # ---- Hidden tile: largest 256-aligned divisor of H_pad (128 fallback). ----
    h_align = 256 if H_pad % 256 == 0 else 128
    th = _largest_aligned_divisor(H_pad, th, h_align)

    # ---- Row tile. ----
    m8 = _round_up(M, 8)
    tm = min(tm, m8)
    # Megacore: on 2-TC chips make sure the 'parallel' row axis has >=2 tiles.
    if two_tc and tm >= m8 and m8 >= 16:
        tm = _round_up(m8 // 2, 8)

    x_item = jnp.dtype(x2.dtype).itemsize
    in_item = jnp.dtype(w1.dtype).itemsize
    out_item = jnp.dtype(out_dtype).itemsize

    # ---- VMEM fit: generation-aware cap, explicit f32 'hid' intermediate. ----
    cap = max(vmem_cap - (12 << 20), 16 << 20)

    def _need(tm_, th_, xb, ob):
        n = (xb * tm_ * E_pad * x_item            # x tiles
             + ob * tm_ * E_pad * out_item        # out tiles
             + 2 * E_pad * th_ * in_item          # W1 tiles (double-buffered)
             + 2 * th_ * E_pad * in_item          # W2 tiles
             + 2 * 8 * th_ * 4                    # b1 (sublane-padded)
             + 2 * 8 * E_pad * 4                  # b2
             + tm_ * E_pad * 4                    # f32 accumulator scratch
             + tm_ * th_ * 4)                     # f32 ReLU intermediate
        return int(1.25 * n) + (2 << 20)          # compiler-internal headroom

    x_bufs = 2
    # Step 1: x/out block index is h-invariant -> single-buffer them first.
    if _need(tm, th, 2, 2) > cap:
        x_bufs = 1
    # Step 2: shrink th (doesn't cost weight-streaming intensity) before tm.
    while _need(tm, th, x_bufs, x_bufs) > cap and th > h_align:
        new_th = _largest_aligned_divisor(H_pad, max(th // 2, h_align), h_align)
        if new_th >= th:
            break
        th = new_th
    # Step 3: last resort, shrink tm (costs arithmetic intensity).
    while _need(tm, th, x_bufs, x_bufs) > cap and tm > 64:
        tm = max(64, _round_up(tm // 2, 8))

    M_pad = _round_up(M, tm)
    if M_pad != M:
        x2 = jnp.pad(x2, ((0, M_pad - M), (0, 0)))

    grid_m = M_pad // tm
    grid_h = H_pad // th

    b1_2d = b1.reshape(1, H_pad)
    b2_2d = b2.reshape(1, E_pad)

    # ---- BlockSpecs (x/out single-buffered only when VMEM is tight). ----
    def xmap(i, h):
        return (i, 0)

    if x_bufs == 1:
        x_spec = pl.BlockSpec((tm, E_pad), xmap, pipeline_mode=pl.Buffered(1))
        out_spec = pl.BlockSpec((tm, E_pad), xmap, pipeline_mode=pl.Buffered(1))
    else:
        x_spec = pl.BlockSpec((tm, E_pad), xmap)
        out_spec = pl.BlockSpec((tm, E_pad), xmap)

    # CostEstimate: weights are re-streamed once per row tile (grid_m passes).
    cost = pl.CostEstimate(
        flops=4 * M_pad * E_pad * H_pad,  # two matmuls: 2*M*E*H each
        transcendentals=0,
        bytes_accessed=int(
            M_pad * E_pad * x_item
            + grid_m * (w1.size + w2.size) * in_item
            + grid_m * (b1.size + b2.size) * 4
            + M_pad * E_pad * out_item),
    )

    vmem_limit = int(max(min(_need(tm, th, x_bufs, x_bufs), cap), 16 << 20))

    out = pl.pallas_call(
        _ffwd_kernel,
        out_shape=jax.ShapeDtypeStruct((M_pad, E_pad), out_dtype),
        grid_spec=pltpu.PrefetchScalarGridSpec(
            num_scalar_prefetch=0,
            grid=(grid_m, grid_h),
            in_specs=[
                x_spec,                                        # x row tile
                pl.BlockSpec((E_pad, th), lambda i, h: (0, h)),  # W1 hidden tile
                pl.BlockSpec((1, th), lambda i, h: (0, h)),      # b1 hidden tile
                pl.BlockSpec((th, E_pad), lambda i, h: (h, 0)),  # W2 hidden tile
                pl.BlockSpec((1, E_pad), lambda i, h: (0, 0)),   # b2
            ],
            out_specs=out_spec,
            scratch_shapes=[pltpu.VMEM((tm, E_pad), jnp.float32)],
        ),
        compiler_params=pltpu.CompilerParams(
            dimension_semantics=("parallel", "arbitrary"),
            vmem_limit_bytes=vmem_limit,
        ),
        cost_estimate=cost,
    )(x2, w1, b1_2d, w2, b2_2d)

    out = out[:M, :E]
    return out.reshape(*lead, E)


def init_params(key, n_embd, dtype=jnp.float32):
    """Deterministic init matching nn.Linear's U(-1/sqrt(fan_in), 1/sqrt(fan_in))."""
    k1, k2, k3, k4 = jax.random.split(key, 4)
    hid = 4 * n_embd
    lim1 = 1.0 / jnp.sqrt(n_embd)
    lim2 = 1.0 / jnp.sqrt(hid)
    # stored as (in, out) == transpose of PyTorch's (out, in) weight
    w1 = jax.random.uniform(k1, (n_embd, hid), dtype, -lim1, lim1)
    b1 = jax.random.uniform(k2, (hid,), dtype, -lim1, lim1)
    w2 = jax.random.uniform(k3, (hid, n_embd), dtype, -lim2, lim2)
    b2 = jax.random.uniform(k4, (n_embd,), dtype, -lim2, lim2)
    return w1, b1, w2, b2


def _reference(x, w1, b1, w2, b2):
    E = x.shape[-1]
    y = jnp.maximum(x.reshape(-1, E) @ w1 + b1, 0.0) @ w2 + b2
    return y.reshape(*x.shape[:-1], E)


if __name__ == "__main__":
    n_embd = 32          # E ; hidden = 4*E = 128
    batch, seq = 2, 8    # 16 rows total

    key = jax.random.PRNGKey(0)
    kx, kp = jax.random.split(key)
    x = jax.random.normal(kx, (batch, seq, n_embd), jnp.float32)
    w1, b1, w2, b2 = init_params(kp, n_embd)

    y = jax.block_until_ready(feed_forward(x, w1, b1, w2, b2))
    ref = _reference(x, w1, b1, w2, b2)
    assert y.shape == (batch, seq, n_embd)
    assert jnp.allclose(y, ref, atol=1e-5, rtol=1e-5)

    # Ragged row count (batch*seq not a multiple of the tile) -> padding path.
    x_ragged = jax.random.normal(kx, (3, 5, n_embd), jnp.float32)
    y_ragged = jax.block_until_ready(feed_forward(x_ragged, w1, b1, w2, b2))
    assert y_ragged.shape == (3, 5, n_embd)
    assert jnp.allclose(y_ragged, _reference(x_ragged, w1, b1, w2, b2),
                        atol=1e-5, rtol=1e-5)

    # Opt-in bf16 fast path (accuracy tradeoff -> loose tolerance).
    y_bf16 = jax.block_until_ready(feed_forward(x, w1, b1, w2, b2, use_bf16=True))
    assert y_bf16.shape == (batch, seq, n_embd)
    assert jnp.allclose(y_bf16, ref, atol=1e-1, rtol=1e-1)

    print("KERNEL_OK")
</pallas_src>

<mosaic_0001>
module attributes {stable_mosaic.version = 11 : i64} {
  func.func @_ffwd_kernel(%arg0: i32, %arg1: i32, %arg2: memref<16x128xf32, #tpu.memory_space<vmem>>, %arg3: memref<128x128xf32, #tpu.memory_space<vmem>>, %arg4: memref<1x128xf32, #tpu.memory_space<vmem>>, %arg5: memref<128x128xf32, #tpu.memory_space<vmem>>, %arg6: memref<1x128xf32, #tpu.memory_space<vmem>>, %arg7: memref<16x128xf32, #tpu.memory_space<vmem>>, %arg8: memref<16x128xf32, #tpu.memory_space<vmem>>) attributes {dimension_semantics = [#tpu.dimension_semantics<parallel>, #tpu.dimension_semantics<arbitrary>], iteration_bounds = array<i64: 1, 1>, scalar_prefetch = 0 : i64, scratch_operands = 1 : i64, tpu.core_type = #tpu.core_type<tc>, window_params = [{transform_indices = @transform_0, window_bounds = array<i64: 16, 128>}, {transform_indices = @transform_1, window_bounds = array<i64: 128, 128>}, {transform_indices = @transform_2, window_bounds = array<i64: 1, 128>}, {transform_indices = @transform_3, window_bounds = array<i64: 128, 128>}, {pipeline_mode = #tpu.pipeline_mode<synchronous>, transform_indices = @transform_4, window_bounds = array<i64: 1, 128>}, {transform_indices = @transform_5, window_bounds = array<i64: 16, 128>}]} {
    %c0_i32 = arith.constant 0 : i32
    %0 = arith.cmpi eq, %arg1, %c0_i32 : i32
    %1 = arith.extui %0 : i1 to i32
    %c0_i32_0 = arith.constant 0 : i32
    %2 = arith.cmpi ne, %1, %c0_i32_0 : i32
    scf.if %2 {
      %cst_16 = arith.constant 0.000000e+00 : f32
      %19 = vector.broadcast %cst_16 : f32 to vector<16x128xf32>
      %c0_17 = arith.constant 0 : index
      %c0_18 = arith.constant 0 : index
      %20 = vector.load %arg8[%c0_17, %c0_18] : memref<16x128xf32, #tpu.memory_space<vmem>>, vector<16x128xf32>
      tpu.vector_store %arg8[%c0_17, %c0_18], %19 {strides = array<i32>} : memref<16x128xf32, #tpu.memory_space<vmem>>, vector<16x128xf32>,
    } else {
    }
    %c0 = arith.constant 0 : index
    %c0_1 = arith.constant 0 : index
    %3 = vector.load %arg2[%c0, %c0_1] : memref<16x128xf32, #tpu.memory_space<vmem>>, vector<16x128xf32>
    %c0_2 = arith.constant 0 : index
    %c0_3 = arith.constant 0 : index
    %4 = vector.load %arg3[%c0_2, %c0_3] : memref<128x128xf32, #tpu.memory_space<vmem>>, vector<128x128xf32>
    %cst = arith.constant dense<0.000000e+00> : vector<16x128xf32>
    %5 = tpu.matmul %3, %4, %cst {dimension_numbers = #tpu.dot_dimension_numbers<[1], [0], [0], [1], [0, 0, 1, 1], [], []>} : vector<16x128xf32>, vector<128x128xf32>, vector<16x128xf32> -> vector<16x128xf32>
    %c0_4 = arith.constant 0 : index
    %c0_5 = arith.constant 0 : index
    %6 = vector.load %arg4[%c0_4, %c0_5] : memref<1x128xf32, #tpu.memory_space<vmem>>, vector<1x128xf32>
    %7 = vector.broadcast %6 : vector<1x128xf32> to vector<16x128xf32>
    %8 = arith.addf %5, %7 : vector<16x128xf32>
    %cst_6 = arith.constant 0.000000e+00 : f32
    %9 = vector.broadcast %cst_6 : f32 to vector<16x128xf32>
    %10 = arith.maximumf %8, %9 : vector<16x128xf32>
    %c0_7 = arith.constant 0 : index
    %c0_8 = arith.constant 0 : index
    %11 = vector.load %arg8[%c0_7, %c0_8] : memref<16x128xf32, #tpu.memory_space<vmem>>, vector<16x128xf32>
    %c0_9 = arith.constant 0 : index
    %c0_10 = arith.constant 0 : index
    %12 = vector.load %arg5[%c0_9, %c0_10] : memref<128x128xf32, #tpu.memory_space<vmem>>, vector<128x128xf32>
    %cst_11 = arith.constant dense<0.000000e+00> : vector<16x128xf32>
    %13 = tpu.matmul %10, %12, %cst_11 {dimension_numbers = #tpu.dot_dimension_numbers<[1], [0], [0], [1], [0, 0, 1, 1], [], []>} : vector<16x128xf32>, vector<128x128xf32>, vector<16x128xf32> -> vector<16x128xf32>
    %14 = arith.addf %11, %13 : vector<16x128xf32>
    %c0_12 = arith.constant 0 : index
    %c0_13 = arith.constant 0 : index
    %15 = vector.load %arg8[%c0_12, %c0_13] : memref<16x128xf32, #tpu.memory_space<vmem>>, vector<16x128xf32>
    tpu.vector_store %arg8[%c0_12, %c0_13], %14 {strides = array<i32>} : memref<16x128xf32, #tpu.memory_space<vmem>>, vector<16x128xf32>,
    %c0_i32_14 = arith.constant 0 : i32
    %16 = arith.cmpi eq, %arg1, %c0_i32_14 : i32
    %17 = arith.extui %16 : i1 to i32
    %c0_i32_15 = arith.constant 0 : i32
    %18 = arith.cmpi ne, %17, %c0_i32_15 : i32
    scf.if %18 {
      %c0_16 = arith.constant 0 : index
      %c0_17 = arith.constant 0 : index
      %19 = vector.load %arg8[%c0_16, %c0_17] : memref<16x128xf32, #tpu.memory_space<vmem>>, vector<16x128xf32>
      %c0_18 = arith.constant 0 : index
      %c0_19 = arith.constant 0 : index
      %20 = vector.load %arg6[%c0_18, %c0_19] : memref<1x128xf32, #tpu.memory_space<vmem>>, vector<1x128xf32>
      %21 = vector.broadcast %20 : vector<1x128xf32> to vector<16x128xf32>
      %22 = arith.addf %19, %21 : vector<16x128xf32>
      %c0_20 = arith.constant 0 : index
      %c0_21 = arith.constant 0 : index
      %23 = vector.load %arg7[%c0_20, %c0_21] : memref<16x128xf32, #tpu.memory_space<vmem>>, vector<16x128xf32>
      tpu.vector_store %arg7[%c0_20, %c0_21], %22 {strides = array<i32>} : memref<16x128xf32, #tpu.memory_space<vmem>>, vector<16x128xf32>,
    } else {
    }
    return
  }
  func.func @transform_0(%arg0: i32, %arg1: i32) -> (i32, i32) {
    %c0_i32 = arith.constant 0 : i32
    %c0_i32_0 = arith.constant 0 : i32
    return %arg0, %c0_i32 : i32, i32
  }
  func.func @transform_1(%arg0: i32, %arg1: i32) -> (i32, i32) {
    %c0_i32 = arith.constant 0 : i32
    %c0_i32_0 = arith.constant 0 : i32
    return %c0_i32, %arg1 : i32, i32
  }
  func.func @transform_2(%arg0: i32, %arg1: i32) -> (i32, i32) {
    %c0_i32 = arith.constant 0 : i32
    %c0_i32_0 = arith.constant 0 : i32
    return %c0_i32, %arg1 : i32, i32
  }
  func.func @transform_3(%arg0: i32, %arg1: i32) -> (i32, i32) {
    %c0_i32 = arith.constant 0 : i32
    %c0_i32_0 = arith.constant 0 : i32
    return %arg1, %c0_i32 : i32, i32
  }
  func.func @transform_4(%arg0: i32, %arg1: i32) -> (i32, i32) {
    %c0_i32 = arith.constant 0 : i32
    %c0_i32_0 = arith.constant 0 : i32
    %c0_i32_1 = arith.constant 0 : i32
    return %c0_i32, %c0_i32_0 : i32, i32
  }
  func.func @transform_5(%arg0: i32, %arg1: i32) -> (i32, i32) {
    %c0_i32 = arith.constant 0 : i32
    %c0_i32_0 = arith.constant 0 : i32
    return %arg0, %c0_i32 : i32, i32
  }
}

</mosaic_0001>

<llo_original>
// kernel: feed_forward.1
$region0: #{feed_forward.1}
  #allocation0 [shape = 'u32[]', space=smem, size = 0x4, offset = 0x4, fixed_abs, tag = 'smem constant byte address 0x4 - core index']
  #allocation1 [shape = 'u32[72,128]{1,0:T(1,128)}', space=vmem, size = 0x9000, scoped, tag = 'internal scratch']
  #allocation2 [shape = 'f32[16,128]{1,0:T(8,128)}', space=vmem, size = 0x2000, scoped, tag = 'scratch operand']
  %s0 = inlined_call_operand.vmem [shape: f32[16,128], index: 0, kind: input, shape index: {}]
  %s1 = inlined_call_operand.vmem [shape: f32[128,128], index: 1, kind: input, shape index: {}]
  %s2 = inlined_call_operand.vmem [shape: f32[1,128], index: 2, kind: input, shape index: {}]
  %s3 = inlined_call_operand.vmem [shape: f32[128,128], index: 3, kind: input, shape index: {}]
  %s4 = inlined_call_operand.vmem [shape: f32[1,128], index: 4, kind: input, shape index: {}]
  %s5 = inlined_call_operand.vmem [shape: f32[16,128], index: 5, kind: output, shape index: {}]
  %s6 = sld [smem:[#allocation0]]
  $region38: #{feed_forward.1} parent=0
    _
  %s8 = ssub.s32 1, %s6
  %s9 = scalar_select 0, %s8, %s6
  // Predicated region
  $region2: #{feed_forward.1} parent=0 // pred_check
    _
  $region3: #{feed_forward.1} parent=0 // pred_check_branch
    %11 = sbr.rel (0) target = $region5
  $region4: #{feed_forward.1} parent=0 // pred_region
    _
  $region5: #{feed_forward.1} parent=0 // pred_fallthru
    _
  // Predicated region
  $region6: #{feed_forward.1} parent=0 // pred_check
    _
  $region7: #{feed_forward.1} parent=0 // pred_check_branch
    %13 = sbr.rel (0) target = $region9
  $region8: #{feed_forward.1} parent=0 // pred_region
    _
  $region9: #{feed_forward.1} parent=0 // pred_fallthru
    _
  // Predicated region
  $region10: #{feed_forward.1} parent=0 // pred_check
    _
  $region11: #{feed_forward.1} parent=0 // pred_check_branch
    %15 = sbr.rel (0) target = $region13
  $region12: #{feed_forward.1} parent=0 // pred_region
    _
  $region13: #{feed_forward.1} parent=0 // pred_fallthru
    _
  // Predicated region
  $region14: #{feed_forward.1} parent=0 // pred_check
    _
  $region15: #{feed_forward.1} parent=0 // pred_check_branch
    %17 = sbr.rel (0) target = $region17
  $region16: #{feed_forward.1} parent=0 // pred_region
    _
  $region17: #{feed_forward.1} parent=0 // pred_fallthru
    _
  // Predicated region
  $region18: #{feed_forward.1} parent=0 // pred_check
    _
  $region19: #{feed_forward.1} parent=0 // pred_check_branch
    %19 = sbr.rel (0) target = $region21
  $region20: #{feed_forward.1} parent=0 // pred_region
    _
  $region21: #{feed_forward.1} parent=0 // pred_fallthru
    _
  %p20 = scmp.eq.s32.totalorder 0, 0
  // Predicated region
  $region22: #{feed_forward.1} parent=0 // pred_check
    %p21 = pneg %p20
  $region23: #{feed_forward.1} parent=0 // pred_check_branch
    %23 = sbr.rel (%p21) target = $region25
  $region24: #{feed_forward.1} parent=0 // pred_region
    %24 = vst [vmem:[#allocation2] sm:$0xff] 0.0
    %25 = vst [vmem:[#allocation2 + $0x8] sm:$0xff] 0.0
  $region25: #{feed_forward.1} parent=0 // pred_fallthru
    _
  %v26 = vld [vmem:[%s0] sm:$0xff]
  %v27 = vld [vmem:[%s0 + $0x8] sm:$0xff]
  %v28 = vld [vmem:[%s1] sm:$0xff]
  %v29 = vld [vmem:[%s1 + $0x8] sm:$0xff]
  %v30 = vld [vmem:[%s1 + $0x10] sm:$0xff]
  %v31 = vld [vmem:[%s1 + $0x18] sm:$0xff]
  %v32 = vld [vmem:[%s1 + $0x20] sm:$0xff]
  %v33 = vld [vmem:[%s1 + $0x28] sm:$0xff]
  %v34 = vld [vmem:[%s1 + $0x30] sm:$0xff]
  %v35 = vld [vmem:[%s1 + $0x38] sm:$0xff]
  %v36 = vld [vmem:[%s1 + $0x40] sm:$0xff]
  %v37 = vld [vmem:[%s1 + $0x48] sm:$0xff]
  %v38 = vld [vmem:[%s1 + $0x50] sm:$0xff]
  %v39 = vld [vmem:[%s1 + $0x58] sm:$0xff]
  %v40 = vld [vmem:[%s1 + $0x60] sm:$0xff]
  %v41 = vld [vmem:[%s1 + $0x68] sm:$0xff]
  %v42 = vld [vmem:[%s1 + $0x70] sm:$0xff]
  %v43 = vld [vmem:[%s1 + $0x78] sm:$0xff]
  %v44 = vld [vmem:[%s2] sm:$0x1]
  %v46 = vperm.slane %v44, 0
  %48 = vmatpush.msra.mxu0 %v43
  %49 = vmatpush.msra.mxu0 %v42
  %50 = vmatpush.msra.mxu0 %v41
  %51 = vmatpush.msra.mxu0 %v40
  %52 = vmatpush.msra.mxu0 %v39
  %53 = vmatpush.msra.mxu0 %v38
  %54 = vmatpush.msra.mxu0 %v37
  %55 = vmatpush.msra.mxu0 %v36
  %56 = vmatpush.msra.mxu0 %v35
  %57 = vmatpush.msra.mxu0 %v34
  %58 = vmatpush.msra.mxu0 %v33
  %59 = vmatpush.msra.mxu0 %v32
  %60 = vmatpush.msra.mxu0 %v31
  %61 = vmatpush.msra.mxu0 %v30
  %62 = vmatpush.msra.mxu0 %v29
  %63 = vmatpush.msra.mxu0 %v28
  %64 = vmatmul.f32.gmra.mxu0 %v26
  %v65 = vpop.f32.mrf.mxu0
  %v66 = vadd.f32 %v46, %v65
  %67 = vmatmul.f32.gmra.mxu0 %v27
  %v68 = vpop.f32.mrf.mxu0
  %v69 = vadd.f32 %v46, %v68
  %70 = vdwg.mxu0
  %v71 = vmax.f32 %v66, 0.0
  %v72 = vmax.f32 %v69, 0.0
  %v73 = vld [vmem:[#allocation2] sm:$0xff]
  %v74 = vld [vmem:[#allocation2 + $0x8] sm:$0xff]
  %v75 = vld [vmem:[%s3] sm:$0xff]
  %v76 = vld [vmem:[%s3 + $0x8] sm:$0xff]
  %v77 = vld [vmem:[%s3 + $0x10] sm:$0xff]
  %v78 = vld [vmem:[%s3 + $0x18] sm:$0xff]
  %v79 = vld [vmem:[%s3 + $0x20] sm:$0xff]
  %v80 = vld [vmem:[%s3 + $0x28] sm:$0xff]
  %v81 = vld [vmem:[%s3 + $0x30] sm:$0xff]
  %v82 = vld [vmem:[%s3 + $0x38] sm:$0xff]
  %v83 = vld [vmem:[%s3 + $0x40] sm:$0xff]
  %v84 = vld [vmem:[%s3 + $0x48] sm:$0xff]
  %v85 = vld [vmem:[%s3 + $0x50] sm:$0xff]
  %v86 = vld [vmem:[%s3 + $0x58] sm:$0xff]
  %v87 = vld [vmem:[%s3 + $0x60] sm:$0xff]
  %v88 = vld [vmem:[%s3 + $0x68] sm:$0xff]
  %v89 = vld [vmem:[%s3 + $0x70] sm:$0xff]
  %v90 = vld [vmem:[%s3 + $0x78] sm:$0xff]
  %91 = vmatpush.msra.mxu0 %v90
  %92 = vmatpush.msra.mxu0 %v89
  %93 = vmatpush.msra.mxu0 %v88
  %94 = vmatpush.msra.mxu0 %v87
  %95 = vmatpush.msra.mxu0 %v86
  %96 = vmatpush.msra.mxu0 %v85
  %97 = vmatpush.msra.mxu0 %v84
  %98 = vmatpush.msra.mxu0 %v83
  %99 = vmatpush.msra.mxu0 %v82
  %100 = vmatpush.msra.mxu0 %v81
  %101 = vmatpush.msra.mxu0 %v80
  %102 = vmatpush.msra.mxu0 %v79
  %103 = vmatpush.msra.mxu0 %v78
  %104 = vmatpush.msra.mxu0 %v77
  %105 = vmatpush.msra.mxu0 %v76
  %106 = vmatpush.msra.mxu0 %v75
  %107 = vmatmul.f32.gmra.mxu0 %v71
  %v108 = vpop.f32.mrf.mxu0
  %v109 = vadd.f32 0.0, %v108
  %110 = vmatmul.f32.gmra.mxu0 %v72
  %v111 = vpop.f32.mrf.mxu0
  %v112 = vadd.f32 0.0, %v111
  %113 = vdwg.mxu0
  %v114 = vadd.f32 %v73, %v109
  %v115 = vadd.f32 %v74, %v112
  %116 = vst [vmem:[#allocation2] sm:$0xff] %v114
  %117 = vst [vmem:[#allocation2 + $0x8] sm:$0xff] %v115
  // Predicated region
  $region26: #{feed_forward.1} parent=0 // pred_check
    %p118 = pneg %p20
  $region27: #{feed_forward.1} parent=0 // pred_check_branch
    %120 = sbr.rel (%p118) target = $region29
  $region28: #{feed_forward.1} parent=0 // pred_region
    %v121 = vld [vmem:[#allocation2] sm:$0xff]
    %v122 = vld [vmem:[#allocation2 + $0x8] sm:$0xff]
    %v123 = vld [vmem:[%s4] sm:$0x1]
    %v125 = vperm.slane %v123, 0
    %v127 = vadd.f32 %v121, %v125
    %v128 = vadd.f32 %v122, %v125
    %129 = vst [vmem:[%s5] sm:$0xff] %v127
    %130 = vst [vmem:[%s5 + $0x8] sm:$0xff] %v128
  $region29: #{feed_forward.1} parent=0 // pred_fallthru
    _
  // Predicated region
  $region30: #{feed_forward.1} parent=0 // pred_check
    _
  $region31: #{feed_forward.1} parent=0 // pred_check_branch
    %132 = sbr.rel (0) target = $region33
  $region32: #{feed_forward.1} parent=0 // pred_region
    _
  $region33: #{feed_forward.1} parent=0 // pred_fallthru
    _
  // Predicated region
  $region34: #{feed_forward.1} parent=0 // pred_check
    _
  $region35: #{feed_forward.1} parent=0 // pred_check_branch
    %134 = sbr.rel (0) target = $region37
  $region36: #{feed_forward.1} parent=0 // pred_region
    _
  $region37: #{feed_forward.1} parent=0 // pred_fallthru
    _

</llo_original>
